<compile_context>
chip_gen: v6e
topology: v6e:2x2x1
jax: 0.10.0
libtpu: 0.0.40
codegen_flags: <defaults>
</compile_context>

<pallas_src>
import jax
import jax.numpy as jnp
from jax.experimental import pallas as pl
from jax.experimental.pallas import tpu as pltpu

_LANES = 128
# Pallas breaks XLA fusion and adds launch overhead; plain XLA elementwise is
# already at HBM roofline, so only auto-switch to Pallas for largish arrays.
_DEFAULT_MIN_PALLAS_ELEMS = 128 * 1024


def _scale_shift_kernel(x_ref, w_ref, b_ref, o_ref):
    # x_ref / o_ref: (tile_rows, lane_w) tile in VMEM.
    # w_ref: (1,) SMEM scalar (torch fc.weight[0, 0]); b_ref: (1,) SMEM scalar.
    o_ref[...] = (x_ref[...] * w_ref[0] + b_ref[0]).astype(o_ref.dtype)


def _pick_lane_width(n):
    """Largest lane width in {1024, 512, 256, 128} dividing n (None if ragged)."""
    for lane_w in (1024, 512, 256, 128):
        if n % lane_w == 0:
            return lane_w
    return None


def _vmem_capacity_bytes():
    try:
        cap = getattr(pltpu.get_tpu_info(), "vmem_capacity_bytes", None)
        if cap:
            return int(cap)
    except Exception:
        pass
    return 64 * 1024 * 1024  # conservative: v7x per-TensorCore VMEM


def _round_up(x, m):
    return ((x + m - 1) // m) * m


def _tile_config(rows, lane_w, itemsize):
    """Return (tile_rows, vmem_limit_bytes) for this generation / problem size."""
    row_quantum = max(8, 32 // itemsize)   # (8,128) f32, (16,128) bf16, (32,128) i8
    if _vmem_capacity_bytes() >= 100 * 1024 * 1024:
        # v5e / v6e: 128 MiB physical VMEM -> 16 MiB tiles, generous scoped limit
        # (explicit so v5e's 16 MiB scoped default never silently caps us).
        tile_bytes, vmem_limit = 16 * 1024 * 1024, 80 * 1024 * 1024
    else:
        # v7x: 64 MiB VMEM per TensorCore -> 8 MiB tiles.
        tile_bytes, vmem_limit = 8 * 1024 * 1024, 40 * 1024 * 1024
    target_rows = max(row_quantum, tile_bytes // (lane_w * itemsize))
    # Keep >= ~8 grid steps (>= 4 per TensorCore on v7x) so the DMA pipeline has
    # work to overlap; prefer more steps over maximal tiles.
    cap_rows = _round_up(max(1, pl.cdiv(rows, 8)), row_quantum)
    tile_rows = max(row_quantum, min(target_rows, cap_rows))
    return (tile_rows // row_quantum) * row_quantum, vmem_limit


def simple_model_forward(x, weight, bias, *,
                         min_pallas_elems=_DEFAULT_MIN_PALLAS_ELEMS):
    """y = x @ weight.T + bias, matching torch.nn.Linear(1, 1).

    x: (..., 1) float; weight: (1, 1) (torch layout: (out, in)); bias: (1,).
    """
    orig_shape = x.shape
    n = x.size
    lane_w = _pick_lane_width(n)

    if lane_w is None or n < max(min_pallas_elems, 8 * _LANES):
        # Fused XLA elementwise is already at HBM roofline.  Used for small
        # arrays (launch overhead, fusion break) and ragged sizes (n % 128 != 0)
        # where a Pallas launch would need a wrapper pad and an output slice --
        # two extra full HBM copies around a memory-bound op.
        # TODO(synk): copy-free ragged-tail handling inside the kernel (masked
        # store of the last partial 128-lane row) if ragged sizes ever matter.
        return x * weight[0, 0] + bias[0]

    rows = n // lane_w
    tile_rows, vmem_limit = _tile_config(rows, lane_w, x.dtype.itemsize)
    # Last block may be partial: Pallas masks its writeback, no row padding.
    grid = (pl.cdiv(rows, tile_rows),)

    x2d = x.reshape(rows, lane_w)      # free: n == rows * lane_w exactly
    w_flat = weight.reshape(1)         # (1,) scalar, resident in SMEM
    b_flat = bias.reshape(1)

    y2d = pl.pallas_call(
        _scale_shift_kernel,
        out_shape=jax.ShapeDtypeStruct((rows, lane_w), x.dtype),
        grid_spec=pltpu.PrefetchScalarGridSpec(
            num_scalar_prefetch=0,
            grid=grid,
            in_specs=[
                pl.BlockSpec((tile_rows, lane_w), lambda i: (i, 0)),   # x tile
                pl.BlockSpec(memory_space=pltpu.MemorySpace.SMEM),     # weight
                pl.BlockSpec(memory_space=pltpu.MemorySpace.SMEM),     # bias
            ],
            out_specs=pl.BlockSpec((tile_rows, lane_w), lambda i: (i, 0)),
        ),
        compiler_params=pltpu.CompilerParams(
            # Lets the runtime split the 1-D row grid across v7x's two
            # TensorCores; harmless on single-TC chips.  (If an xprof trace
            # shows only one TC busy, escalate to a leading length-2
            # CORE_PARALLEL axis.)
            dimension_semantics=("parallel",),
            # 2 double-buffered arrays x tile_bytes, plus headroom.
            vmem_limit_bytes=vmem_limit,
        ),
    )(x2d, w_flat, b_flat)

    return y2d.reshape(orig_shape)     # free: exactly n elements, no slice


if __name__ == "__main__":
    key = jax.random.PRNGKey(0)
    k1, k2, k3 = jax.random.split(key, 3)

    # nn.Linear(1, 1) parameters (torch layout: weight (out=1, in=1), bias (1,)).
    weight = jnp.array([[0.5]], dtype=jnp.float32)
    bias = jnp.array([-0.25], dtype=jnp.float32)

    # 1) Pallas path (forced below the auto crossover): n = 6400 is a multiple
    #    of 128 but not 1024, and not a multiple of tile_rows, so this exercises
    #    lane-width selection, a multi-step grid, and the masked partial final
    #    block -- all with zero wrapper-side pad/slice copies.
    x = jax.random.normal(k1, (6400, 1), dtype=jnp.float32)
    y = jax.block_until_ready(
        simple_model_forward(x, weight, bias, min_pallas_elems=0))
    assert y.shape == x.shape
    assert jnp.allclose(y, x @ weight.T + bias, atol=1e-6, rtol=1e-6)

    # 2) Ragged size (n % 128 != 0): copy-free fused-XLA fallback.
    x_r = jax.random.normal(k2, (1000, 1), dtype=jnp.float32)
    y_r = jax.block_until_ready(simple_model_forward(x_r, weight, bias))
    assert jnp.allclose(y_r, x_r @ weight.T + bias, atol=1e-6, rtol=1e-6)

    # 3) Tiny batch: stays on the fallback (below the raised crossover).
    x_t = jax.random.normal(k3, (8, 1), dtype=jnp.float32)
    y_t = jax.block_until_ready(simple_model_forward(x_t, weight, bias))
    assert jnp.allclose(y_t, x_t @ weight.T + bias, atol=1e-6, rtol=1e-6)

    print("KERNEL_OK")
</pallas_src>

<mosaic_0001>
module attributes {stable_mosaic.version = 11 : i64} {
  func.func @_scale_shift_kernel(%arg0: i32, %arg1: memref<8x256xf32, #tpu.memory_space<vmem>>, %arg2: memref<1xf32, #tpu.memory_space<smem>>, %arg3: memref<1xf32, #tpu.memory_space<smem>>, %arg4: memref<8x256xf32, #tpu.memory_space<vmem>>) attributes {dimension_semantics = [#tpu.dimension_semantics<parallel>], iteration_bounds = array<i64: 4>, scalar_prefetch = 0 : i64, scratch_operands = 0 : i64, tpu.core_type = #tpu.core_type<tc>, window_params = [{transform_indices = @transform_0, window_bounds = array<i64: 8, 256>}, {transform_indices = @transform_1, window_bounds = array<i64: 1>}, {transform_indices = @transform_2, window_bounds = array<i64: 1>}, {transform_indices = @transform_3, window_bounds = array<i64: 8, 256>}]} {
    %c0 = arith.constant 0 : index
    %c0_0 = arith.constant 0 : index
    %0 = vector.load %arg1[%c0, %c0_0] : memref<8x256xf32, #tpu.memory_space<vmem>>, vector<8x256xf32>
    %c0_1 = arith.constant 0 : index
    %1 = memref.load %arg2[%c0_1] : memref<1xf32, #tpu.memory_space<smem>>
    %2 = vector.broadcast %1 : f32 to vector<8x256xf32>
    %3 = arith.mulf %0, %2 : vector<8x256xf32>
    %c0_2 = arith.constant 0 : index
    %4 = memref.load %arg3[%c0_2] : memref<1xf32, #tpu.memory_space<smem>>
    %5 = vector.broadcast %4 : f32 to vector<8x256xf32>
    %6 = arith.addf %3, %5 : vector<8x256xf32>
    %c0_3 = arith.constant 0 : index
    %c0_4 = arith.constant 0 : index
    %7 = vector.load %arg4[%c0_3, %c0_4] : memref<8x256xf32, #tpu.memory_space<vmem>>, vector<8x256xf32>
    tpu.vector_store %arg4[%c0_3, %c0_4], %6 {strides = array<i32>} : memref<8x256xf32, #tpu.memory_space<vmem>>, vector<8x256xf32>,
    return
  }
  func.func @transform_0(%arg0: i32) -> (i32, i32) {
    %c0_i32 = arith.constant 0 : i32
    %c0_i32_0 = arith.constant 0 : i32
    return %arg0, %c0_i32 : i32, i32
  }
  func.func @transform_1(%arg0: i32) -> i32 {
    %c0_i32 = arith.constant 0 : i32
    %c0_i32_0 = arith.constant 0 : i32
    return %c0_i32 : i32
  }
  func.func @transform_2(%arg0: i32) -> i32 {
    %c0_i32 = arith.constant 0 : i32
    %c0_i32_0 = arith.constant 0 : i32
    return %c0_i32 : i32
  }
  func.func @transform_3(%arg0: i32) -> (i32, i32) {
    %c0_i32 = arith.constant 0 : i32
    %c0_i32_0 = arith.constant 0 : i32
    return %arg0, %c0_i32 : i32, i32
  }
}

</mosaic_0001>

<llo_original>
// kernel: tpu_custom_call.1
$region0: #{tpu_custom_call.1}
  #allocation0 [shape = 'u32[]', space=smem, size = 0x4, offset = 0x4, fixed_abs, tag = 'smem constant byte address 0x4 - core index']
  #allocation1 [shape = 'u32[144,128]{1,0:T(1,128)}', space=vmem, size = 0x12000, scoped, tag = 'internal scratch']
  #allocation2 [shape = 'f32[1]{0:T(128)S(6)}', space=smem, size = 0x200, scoped, tag = 'scoped memory for tpu_custom_call.1']
  #allocation3 [shape = 'f32[1]{0:T(128)S(6)}', space=smem, size = 0x200, scoped, tag = 'scoped memory for tpu_custom_call.1']
  %s0 = inlined_call_operand.hbm [shape: f32[25,256], index: 0, kind: input, shape index: {}]
  %s1 = inlined_call_operand.<no memory space> [shape: f32[1], index: 1, kind: input, shape index: {}]
  %s2 = inlined_call_operand.<no memory space> [shape: f32[1], index: 2, kind: input, shape index: {}]
  %s3 = inlined_call_operand.hbm [shape: f32[25,256], index: 3, kind: output, shape index: {}]
  %s4 = sld [smem:[#allocation0]]
  $region49: #{tpu_custom_call.1} parent=0
    _
  %s6 = ssub.s32 1, %s4
  %s7 = scalar_select 0, %s6, %s4
  %8 = sst [smem:[#allocation2]] %s1
  %9 = sst [smem:[#allocation3]] %s2
  $region1: #{tpu_custom_call.1} parent=0
    #allocation4 [shape = 'u8[16384]{0}', space=vmem, size = 0x4000, scoped, tag = 'input window, operand 0']
    #allocation5 [shape = 's32[2]{0}', space=sflag, size = 0x8, scoped, tag = 'scoped memory for tpu_custom_call.1']
    #allocation6 [shape = 's32[2]{0}', space=sflag, size = 0x8, scoped, tag = 'scoped memory for tpu_custom_call.1']
    #allocation7 [shape = 'u8[16384]{0}', space=vmem, size = 0x4000, scoped, tag = 'output window, operand 0']
    %10 = vsyncpa [#allocation5], 0
    %s11 = scalar_lea.sflag [#allocation5], 1
    %12 = vsyncpa %s11, 0
    %13 = vsyncpa [#allocation6], 0
    %s14 = scalar_lea.sflag [#allocation6], 1
    %15 = vsyncpa %s14, 0
    loop: start=0, step=1, limit=6
    $region2: #{tpu_custom_call.1} parent=1 // loop_pre_header
      _
    $region3: #{tpu_custom_call.1} parent=1 // loop_header
      %s17 = sphi 0, %s21
      %p18 = scmp.ge.s32.totalorder %s17, 6
      %s27 = sphi 0, %s29
      %s30 = sphi 0, %s27
      %s31 = sphi 0, %s30
      %s47 = sphi 0, %s31
      %s51 = sphi 0, %s51
      %s53 = sphi 0, %s51
      %s54 = sphi 0, %s53
      %s68 = sphi 0, %s54
      %s72 = sphi 0, %s72
      %s74 = sphi 0, %s72
      %s75 = sphi 0, %s74
      %s89 = sphi 0, %s75
      %s95 = sphi 0, %s97
      %s98 = sphi 0, %s95
      %s99 = sphi 0, %s98
      %s115 = sphi 0, %s99
    $region4: #{tpu_custom_call.1} parent=1 // loop_header_branch
      %20 = sbr.rel (%p18) target = $region8
    $region5: #{tpu_custom_call.1} parent=1 // loop_body
      %s22 = ssub.s32 %s17, 1
      %s23 = ssub.s32 %s17, 2
      %s24 = sadd.s32 %s17, 1
      %s25 = ssub.s32 %s17, %s24
      %p26 = scmp.eq.s32.totalorder %s25, 0
      %s28 = sadd.s32 %s27, 1
      %s29 = scalar_select %p26, %s27, %s28
      %p32 = pneg %p26
      %p33 = scmp.eq.s32.totalorder %s17, 3
      %p34 = por %p32, %p33
      %p35 = scmp.ne.s32.totalorder %s27, %s30
      %p36 = scmp.eq.s32.totalorder %s17, 0
      %p37 = por %p35, %p36
      %p38 = scmp.ne.s32.totalorder %s27, %s30
      %p39 = scmp.eq.s32.totalorder %s22, 3
      %p40 = por %p38, %p39
      %p41 = scmp.ne.s32.totalorder %s30, %s31
      %p42 = scmp.eq.s32.totalorder %s22, 0
      %p43 = por %p41, %p42
      %p44 = scmp.ne.s32.totalorder %s30, %s31
      %p45 = scmp.eq.s32.totalorder %s23, 3
      %p46 = por %p44, %p45
      %p48 = scmp.ne.s32.totalorder %s31, %s47
      %p49 = scmp.eq.s32.totalorder %s23, 0
      %p50 = por %p48, %p49
      %s52 = sadd.s32 %s51, 1
      %p55 = scmp.eq.s32.totalorder %s17, 3
      %p56 = scmp.ne.s32.totalorder %s51, %s53
      %p57 = scmp.eq.s32.totalorder %s17, 0
      %p58 = por %p56, %p57
      %p59 = scmp.ne.s32.totalorder %s51, %s53
      %p60 = scmp.eq.s32.totalorder %s22, 3
      %p61 = por %p59, %p60
      %p62 = scmp.ne.s32.totalorder %s53, %s54
      %p63 = scmp.eq.s32.totalorder %s22, 0
      %p64 = por %p62, %p63
      %p65 = scmp.ne.s32.totalorder %s53, %s54
      %p66 = scmp.eq.s32.totalorder %s23, 3
      %p67 = por %p65, %p66
      %p69 = scmp.ne.s32.totalorder %s54, %s68
      %p70 = scmp.eq.s32.totalorder %s23, 0
      %p71 = por %p69, %p70
      %s73 = sadd.s32 %s72, 1
      %p76 = scmp.eq.s32.totalorder %s17, 3
      %p77 = scmp.ne.s32.totalorder %s72, %s74
      %p78 = scmp.eq.s32.totalorder %s17, 0
      %p79 = por %p77, %p78
      %p80 = scmp.ne.s32.totalorder %s72, %s74
      %p81 = scmp.eq.s32.totalorder %s22, 3
      %p82 = por %p80, %p81
      %p83 = scmp.ne.s32.totalorder %s74, %s75
      %p84 = scmp.eq.s32.totalorder %s22, 0
      %p85 = por %p83, %p84
      %p86 = scmp.ne.s32.totalorder %s74, %s75
      %p87 = scmp.eq.s32.totalorder %s23, 3
      %p88 = por %p86, %p87
      %p90 = scmp.ne.s32.totalorder %s75, %s89
      %p91 = scmp.eq.s32.totalorder %s23, 0
      %p92 = por %p90, %p91
      %s93 = ssub.s32 %s17, %s24
      %p94 = scmp.eq.s32.totalorder %s93, 0
      %s96 = sadd.s32 %s95, 1
      %s97 = scalar_select %p94, %s95, %s96
      %p100 = pneg %p94
      %p101 = scmp.eq.s32.totalorder %s17, 3
      %p102 = por %p100, %p101
      %p103 = scmp.ne.s32.totalorder %s95, %s98
      %p104 = scmp.eq.s32.totalorder %s17, 0
      %p105 = por %p103, %p104
      %p106 = scmp.ne.s32.totalorder %s95, %s98
      %p107 = scmp.eq.s32.totalorder %s22, 3
      %p108 = por %p106, %p107
      %p109 = scmp.ne.s32.totalorder %s98, %s99
      %p110 = scmp.eq.s32.totalorder %s22, 0
      %p111 = por %p109, %p110
      %p112 = scmp.ne.s32.totalorder %s98, %s99
      %p113 = scmp.eq.s32.totalorder %s23, 3
      %p114 = por %p112, %p113
      %p116 = scmp.ne.s32.totalorder %s99, %s115
      %p117 = scmp.eq.s32.totalorder %s23, 0
      %p118 = por %p116, %p117
      %p119 = scmp.le.s32.totalorder 1, %s17
      %p120 = scmp.lt.s32.totalorder %s17, 5
      %p121 = pnand %p119, %p120
      %p122 = pneg %p121
      // Predicated region
      $region9: #{tpu_custom_call.1} parent=5 // pred_check
        _
      $region10: #{tpu_custom_call.1} parent=5 // pred_check_branch
        %124 = sbr.rel (%p121) target = $region12
      $region11: #{tpu_custom_call.1} parent=5 // pred_region
        %s125 = ssub.s32 %s17, 1
        // Predicated region
        $region13: #{tpu_custom_call.1} parent=11 // pred_check
          %p126 = pneg %p64
        $region14: #{tpu_custom_call.1} parent=11 // pred_check_branch
          %128 = sbr.rel (%p126) target = $region16
        $region15: #{tpu_custom_call.1} parent=11 // pred_region
          _
        $region16: #{tpu_custom_call.1} parent=11 // pred_fallthru
          _
        // Predicated region
        $region17: #{tpu_custom_call.1} parent=11 // pred_check
          %p129 = pneg %p85
        $region18: #{tpu_custom_call.1} parent=11 // pred_check_branch
          %131 = sbr.rel (%p129) target = $region20
        $region19: #{tpu_custom_call.1} parent=11 // pred_region
          _
        $region20: #{tpu_custom_call.1} parent=11 // pred_fallthru
          _
      $region12: #{tpu_custom_call.1} parent=5 // pred_fallthru
        _
      %p132 = scmp.lt.s32.totalorder %s17, 4
      // Predicated region
      $region21: #{tpu_custom_call.1} parent=5 // pred_check
        %p133 = pneg %p132
      $region22: #{tpu_custom_call.1} parent=5 // pred_check_branch
        %135 = sbr.rel (%p133) target = $region24
      $region23: #{tpu_custom_call.1} parent=5 // pred_region
        // Predicated region
        $region25: #{tpu_custom_call.1} parent=23 // pred_check
          %p136 = pneg %p37
        $region26: #{tpu_custom_call.1} parent=23 // pred_check_branch
          %138 = sbr.rel (%p136) target = $region28
        $region27: #{tpu_custom_call.1} parent=23 // pred_region
          %s139 = sand.u32 %s27, 1
          %s140 = scalar_lea.sflag [#allocation5], %s139
          %s141 = sand.u32 %s27, 1
          %s142 = smul.addr %s141, 16
          %s143 = scalar_lea.vmem [#allocation4], %s142
          %s145 = ssub.s32 256, 256
          %146 = vsyncadd %s140, %s145
          %s147 = smul.addr %s17, 2
          %s148 = smul.addr %s147, 128
          %s149 = scalar_lea.hbm %s0, %s148
          %s151 = sshll.u32 %s143, 4
          %s152 = int_to_ptr.vmem [resolvable:$true] %s151
          %154 = dma.hbm_to_vmem [thread:$0]  %s149, 256, %s152, %s140
        $region28: #{tpu_custom_call.1} parent=23 // pred_fallthru
          _
      $region24: #{tpu_custom_call.1} parent=5 // pred_fallthru
        _
      %p155 = scmp.le.s32.totalorder 1, %s17
      %p156 = scmp.lt.s32.totalorder %s17, 5
      %p157 = pnand %p155, %p156
      %p158 = pneg %p157
      // Predicated region
      $region29: #{tpu_custom_call.1} parent=5 // pred_check
        _
      $region30: #{tpu_custom_call.1} parent=5 // pred_check_branch
        %160 = sbr.rel (%p157) target = $region32
      $region31: #{tpu_custom_call.1} parent=5 // pred_region
        %s161 = ssub.s32 %s17, 1
        %s162 = sand.u32 %s30, 1
        %s163 = scalar_lea.sflag [#allocation5], %s162
        %s164 = sand.u32 %s30, 1
        %s165 = smul.addr %s164, 16
        %s166 = scalar_lea.vmem [#allocation4], %s165
        // Predicated region
        $region33: #{tpu_custom_call.1} parent=31 // pred_check
          %p167 = pneg %p43
        $region34: #{tpu_custom_call.1} parent=31 // pred_check_branch
          %169 = sbr.rel (%p167) target = $region36
        $region35: #{tpu_custom_call.1} parent=31 // pred_region
          %170 = dma.done %s163, 256
        $region36: #{tpu_custom_call.1} parent=31 // pred_fallthru
          _
        %s171 = sand.u32 %s30, 1
        %s172 = scalar_lea.sflag [#allocation5], %s171
        %s173 = sand.u32 %s30, 1
        %s174 = smul.addr %s173, 16
        %s175 = scalar_lea.vmem [#allocation4], %s174
        %p176 = pneg %p43
        %p177 = pneg %p40
        %p178 = pneg %p64
        %p179 = pneg %p61
        %p180 = pneg %p85
        %p181 = pneg %p82
        %p182 = pneg %p111
        %p183 = pneg %p108
        %s184 = sand.u32 %s98, 1
        %s185 = scalar_lea.sflag [#allocation6], %s184
        %s186 = sand.u32 %s98, 1
        %s187 = smul.addr %s186, 16
        %s188 = scalar_lea.vmem [#allocation7], %s187
        %v189 = vld [vmem:[%s166] sm:$0xff]
        %v190 = vld [vmem:[%s166 + $0x8] sm:$0xff]
        %s191 = sld [smem:[#allocation2]]
        %v192 = vstv %s191
        %v193 = vmul.f32 %v189, %v192
        %v194 = vmul.f32 %v190, %v192
        %s195 = sld [smem:[#allocation3]]
        %v196 = vstv %s195
        %v197 = vadd.f32 %v193, %v196
        %v198 = vadd.f32 %v194, %v196
        %199 = vst [vmem:[%s188] sm:$0xff] %v197
        %200 = vst [vmem:[%s188 + $0x8] sm:$0xff] %v198
        %s201 = sand.u32 %s98, 1
        %s202 = scalar_lea.sflag [#allocation6], %s201
        %s203 = sand.u32 %s98, 1
        %s204 = smul.addr %s203, 16
        %s205 = scalar_lea.vmem [#allocation7], %s204
        // Predicated region
        $region37: #{tpu_custom_call.1} parent=31 // pred_check
          %p206 = pneg %p108
        $region38: #{tpu_custom_call.1} parent=31 // pred_check_branch
          %208 = sbr.rel (%p206) target = $region40
        $region39: #{tpu_custom_call.1} parent=31 // pred_region
          %s210 = ssub.s32 256, 256
          %211 = vsyncadd %s202, %s210
          %s212 = smul.addr %s22, 2
          %s213 = smul.addr %s212, 128
          %s214 = scalar_lea.hbm %s3, %s213
          %s216 = sshll.u32 %s205, 4
          %s217 = int_to_ptr.vmem [resolvable:$true] %s216
          %219 = dma.vmem_to_hbm [thread:$0]  %s217, 256, %s214, %s202
        $region40: #{tpu_custom_call.1} parent=31 // pred_fallthru
          _
      $region32: #{tpu_custom_call.1} parent=5 // pred_fallthru
        _
      %p220 = scmp.le.s32.totalorder 2, %s17
      // Predicated region
      $region41: #{tpu_custom_call.1} parent=5 // pred_check
        %p221 = pneg %p220
      $region42: #{tpu_custom_call.1} parent=5 // pred_check_branch
        %223 = sbr.rel (%p221) target = $region44
      $region43: #{tpu_custom_call.1} parent=5 // pred_region
        %s224 = ssub.s32 %s17, 2
        // Predicated region
        $region45: #{tpu_custom_call.1} parent=43 // pred_check
          %p225 = pneg %p114
        $region46: #{tpu_custom_call.1} parent=43 // pred_check_branch
          %227 = sbr.rel (%p225) target = $region48
        $region47: #{tpu_custom_call.1} parent=43 // pred_region
          %s228 = sand.u32 %s99, 1
          %s229 = scalar_lea.sflag [#allocation6], %s228
          %s230 = sand.u32 %s99, 1
          %s231 = smul.addr %s230, 16
          %s232 = scalar_lea.vmem [#allocation7], %s231
          %233 = dma.done %s229, 256
        $region48: #{tpu_custom_call.1} parent=43 // pred_fallthru
          _
      $region44: #{tpu_custom_call.1} parent=5 // pred_fallthru
        _
    $region6: #{tpu_custom_call.1} parent=1 // loop_footer
      %s21 = sadd.s32 1, %s17
    $region7: #{tpu_custom_call.1} parent=1 // loop_footer_branch
      %16 = sbr.rel target = $region3
    $region8: #{tpu_custom_call.1} parent=1 // loop_exit
      _
    %234 = vsyncpa [#allocation5], 1
    %s235 = scalar_lea.sflag [#allocation5], 1
    %236 = vsyncpa %s235, 1
    %237 = vsyncpa [#allocation6], 1
    %s238 = scalar_lea.sflag [#allocation6], 1
    %239 = vsyncpa %s238, 1

</llo_original>
